<compile_context>
chip_gen: v5e
topology: v5e:2x2
jax: 0.10.0
libtpu: 0.0.40
codegen_flags: <defaults>
</compile_context>

<pallas_src>
import math

import jax
import jax.numpy as jnp
from jax.experimental import pallas as pl
from jax.experimental.pallas import tpu as pltpu


# ---------------------------------------------------------------------------
# Kernel: one batch tile of the fused twin-Q MLP.
# ---------------------------------------------------------------------------
def _twinq_kernel(
    state_ref, action_ref,          # streaming inputs (TILE_B, S) / (TILE_B, A)
    w1s_ref, w1a_ref, b1_ref,       # fused layer 1 (split over state/action)
    w2_ref, b2_ref,                 # fused layer 2 (block-diagonal, 2H x 2H)
    w3_ref, b3_ref,                 # fused head (block-diagonal, 2H x 2)
    out_ref,                        # (TILE_B, 1)  min(q1, q2)
):
    s = state_ref[...]
    a = action_ref[...]

    def dot(x, w_ref):
        w = w_ref[...]
        # Cast operand to the weight dtype (no-op in f32 mode, bf16 in bf16
        # mode); always accumulate in f32 on the MXU.
        return jnp.dot(x.astype(w.dtype), w, preferred_element_type=jnp.float32)

    h = dot(s, w1s_ref) + dot(a, w1a_ref) + b1_ref[...]     # (TB, 2H) f32
    h = jnp.maximum(h, 0.0)                                 # ReLU (VPU, f32)
    h = dot(h, w2_ref) + b2_ref[...]                        # (TB, 2H) f32
    h = jnp.maximum(h, 0.0)
    q = dot(h, w3_ref) + b3_ref[...]                        # (TB, 2) = [q1, q2]
    out_ref[...] = jnp.min(q, axis=-1, keepdims=True)       # (TB, 1)


# ---------------------------------------------------------------------------
# Parameter init (PyTorch nn.Linear default init, weights pre-transposed).
# ---------------------------------------------------------------------------
def init_linear(key, fan_in, fan_out):
    kw, kb = jax.random.split(key)
    bound = 1.0 / math.sqrt(fan_in)
    w = jax.random.uniform(kw, (fan_in, fan_out), jnp.float32, -bound, bound)
    b = jax.random.uniform(kb, (1, fan_out), jnp.float32, -bound, bound)
    return w, b


def init_twinq_params(key, state_dim, action_dim, hidden_dim=32, n_hidden=2):
    assert n_hidden == 2, "kernel hard-codes the [in, H, H, 1] MLP shape"
    in_dim = state_dim + action_dim
    keys = jax.random.split(key, 6)
    w1a, b1a = init_linear(keys[0], in_dim, hidden_dim)
    w2a, b2a = init_linear(keys[1], hidden_dim, hidden_dim)
    w3a, b3a = init_linear(keys[2], hidden_dim, 1)
    w1b, b1b = init_linear(keys[3], in_dim, hidden_dim)
    w2b, b2b = init_linear(keys[4], hidden_dim, hidden_dim)
    w3b, b3b = init_linear(keys[5], hidden_dim, 1)
    return (w1a, b1a, w2a, b2a, w3a, b3a,
            w1b, b1b, w2b, b2b, w3b, b3b)


# ---------------------------------------------------------------------------
# Wrapper-side parameter fusion (exact, block-diagonal twin fusion).
# ---------------------------------------------------------------------------
def pack_twinq_params(params, state_dim, compute_dtype=jnp.float32):
    (w1a, b1a, w2a, b2a, w3a, b3a,
     w1b, b1b, w2b, b2b, w3b, b3b) = params
    hidden = w1a.shape[1]

    # Layer 1: stack the two nets along the output (lane) axis.
    w1 = jnp.concatenate([w1a, w1b], axis=1)                       # (S+A, 2H)
    w1_s = w1[:state_dim].astype(compute_dtype)                    # (S, 2H)
    w1_a = w1[state_dim:].astype(compute_dtype)                    # (A, 2H)
    b1 = jnp.concatenate([b1a, b1b], axis=1).astype(jnp.float32)   # (1, 2H)

    # Layer 2: block-diagonal so the two halves of h never mix.
    zeros_hh = jnp.zeros((hidden, hidden), jnp.float32)
    w2 = jnp.concatenate(
        [jnp.concatenate([w2a, zeros_hh], axis=1),
         jnp.concatenate([zeros_hh, w2b], axis=1)], axis=0
    ).astype(compute_dtype)                                        # (2H, 2H)
    b2 = jnp.concatenate([b2a, b2b], axis=1).astype(jnp.float32)   # (1, 2H)

    # Head: ALSO block-diagonal -> (2H, 2); column 0 reads the q1 half of h,
    # column 1 reads the q2 half.  (Previous version wrongly built (H, 2).)
    zeros_h1 = jnp.zeros((hidden, 1), jnp.float32)
    w3 = jnp.concatenate(
        [jnp.concatenate([w3a, zeros_h1], axis=1),
         jnp.concatenate([zeros_h1, w3b], axis=1)], axis=0
    ).astype(jnp.float32)                                          # (2H, 2)
    b3 = jnp.concatenate([b3a, b3b], axis=1).astype(jnp.float32)   # (1, 2)
    return (w1_s, w1_a, b1, w2, b2, w3, b3)


def _round_up(x, m):
    return (x + m - 1) // m * m


# ---------------------------------------------------------------------------
# Forward: equivalent of TwinQ.forward(state, action) -> (B,) float32.
# ---------------------------------------------------------------------------
def twinq_forward(state, action, params, *, tile_b=1024,
                  compute_dtype=jnp.float32):
    B, S = state.shape
    A = action.shape[1]
    w1_s, w1_a, b1, w2, b2, w3, b3 = pack_twinq_params(
        params, S, compute_dtype=compute_dtype)

    state = state.astype(compute_dtype)
    action = action.astype(compute_dtype)

    # Row alignment: 8 sublanes for f32, 16 for packed bf16.
    row_align = 16 if compute_dtype == jnp.bfloat16 else 8
    tb = min(tile_b, _round_up(B, row_align))
    tb = max(row_align, _round_up(tb, row_align))
    b_pad = _round_up(B, tb)
    if b_pad != B:
        state = jnp.pad(state, ((0, b_pad - B), (0, 0)))
        action = jnp.pad(action, ((0, b_pad - B), (0, 0)))

    grid = (b_pad // tb,)
    batch_map = lambda i: (i, 0)     # stream over batch tiles
    const_map = lambda i: (0, 0)     # weights stay VMEM-resident

    out = pl.pallas_call(
        _twinq_kernel,
        out_shape=jax.ShapeDtypeStruct((b_pad, 1), jnp.float32),
        grid=grid,
        in_specs=[
            pl.BlockSpec((tb, S), batch_map),
            pl.BlockSpec((tb, A), batch_map),
            pl.BlockSpec(w1_s.shape, const_map),
            pl.BlockSpec(w1_a.shape, const_map),
            pl.BlockSpec(b1.shape, const_map),
            pl.BlockSpec(w2.shape, const_map),
            pl.BlockSpec(b2.shape, const_map),
            pl.BlockSpec(w3.shape, const_map),
            pl.BlockSpec(b3.shape, const_map),
        ],
        out_specs=pl.BlockSpec((tb, 1), batch_map),
        compiler_params=pltpu.CompilerParams(
            dimension_semantics=("parallel",),      # megacore / v7x 2-TC split
            vmem_limit_bytes=32 * 1024 * 1024,      # safe on v5e/v6e/v7x
        ),
    )(state, action, w1_s, w1_a, b1, w2, b2, w3, b3)

    return out[:B, 0]                 # squeeze_output=True semantics -> (B,)


# ---------------------------------------------------------------------------
# Pure-JAX reference (unfused, f32) for correctness checking.
# ---------------------------------------------------------------------------
def twinq_forward_ref(state, action, params):
    (w1a, b1a, w2a, b2a, w3a, b3a,
     w1b, b1b, w2b, b2b, w3b, b3b) = params
    sa = jnp.concatenate([state, action], axis=1).astype(jnp.float32)

    def mlp(w1, b1, w2, b2, w3, b3):
        h = jnp.maximum(sa @ w1 + b1, 0.0)
        h = jnp.maximum(h @ w2 + b2, 0.0)
        return (h @ w3 + b3)[:, 0]

    return jnp.minimum(mlp(w1a, b1a, w2a, b2a, w3a, b3a),
                       mlp(w1b, b1b, w2b, b2b, w3b, b3b))


if __name__ == "__main__":
    key = jax.random.PRNGKey(0)
    k_param, k_state, k_action = jax.random.split(key, 3)

    # Small, deterministic example shapes.
    batch, state_dim, action_dim, hidden_dim = 8, 16, 8, 32
    params = init_twinq_params(k_param, state_dim, action_dim, hidden_dim)
    state = jax.random.normal(k_state, (batch, state_dim), jnp.float32)
    action = jax.random.normal(k_action, (batch, action_dim), jnp.float32)

    q_ref = jax.block_until_ready(twinq_forward_ref(state, action, params))

    # f32 path (tight tolerance).
    q_f32 = jax.block_until_ready(twinq_forward(state, action, params))
    assert q_f32.shape == (batch,)
    assert jnp.allclose(q_f32, q_ref, atol=1e-5, rtol=1e-5)

    # bf16-streamed path (loose tolerance, halves HBM input traffic).
    q_bf16 = jax.block_until_ready(
        twinq_forward(state, action, params, compute_dtype=jnp.bfloat16))
    assert q_bf16.shape == (batch,)
    assert jnp.allclose(q_bf16, q_ref, atol=5e-2, rtol=5e-2)

    # Multi-tile grid path with non-multiple batch (exercises padding +
    # software pipelining over the batch grid).
    k2s, k2a = jax.random.split(jax.random.PRNGKey(1))
    big_b = 300
    state2 = jax.random.normal(k2s, (big_b, state_dim), jnp.float32)
    action2 = jax.random.normal(k2a, (big_b, action_dim), jnp.float32)
    q_big = jax.block_until_ready(
        twinq_forward(state2, action2, params, tile_b=128))
    q_big_ref = jax.block_until_ready(twinq_forward_ref(state2, action2, params))
    assert q_big.shape == (big_b,)
    assert jnp.allclose(q_big, q_big_ref, atol=1e-5, rtol=1e-5)

    print("KERNEL_OK")
</pallas_src>

<mosaic_0001>
module attributes {stable_mosaic.version = 11 : i64} {
  func.func @_twinq_kernel(%arg0: i32, %arg1: memref<8x16xf32, #tpu.memory_space<vmem>>, %arg2: memref<8x8xf32, #tpu.memory_space<vmem>>, %arg3: memref<16x64xf32, #tpu.memory_space<vmem>>, %arg4: memref<8x64xf32, #tpu.memory_space<vmem>>, %arg5: memref<1x64xf32, #tpu.memory_space<vmem>>, %arg6: memref<64x64xf32, #tpu.memory_space<vmem>>, %arg7: memref<1x64xf32, #tpu.memory_space<vmem>>, %arg8: memref<64x2xf32, #tpu.memory_space<vmem>>, %arg9: memref<1x2xf32, #tpu.memory_space<vmem>>, %arg10: memref<8x1xf32, #tpu.memory_space<vmem>>) attributes {dimension_semantics = [#tpu.dimension_semantics<parallel>], iteration_bounds = array<i64: 1>, scalar_prefetch = 0 : i64, scratch_operands = 0 : i64, tpu.core_type = #tpu.core_type<tc>, window_params = [{transform_indices = @transform_0, window_bounds = array<i64: 8, 16>}, {transform_indices = @transform_1, window_bounds = array<i64: 8, 8>}, {pipeline_mode = #tpu.pipeline_mode<synchronous>, transform_indices = @transform_2, window_bounds = array<i64: 16, 64>}, {pipeline_mode = #tpu.pipeline_mode<synchronous>, transform_indices = @transform_3, window_bounds = array<i64: 8, 64>}, {pipeline_mode = #tpu.pipeline_mode<synchronous>, transform_indices = @transform_4, window_bounds = array<i64: 1, 64>}, {pipeline_mode = #tpu.pipeline_mode<synchronous>, transform_indices = @transform_5, window_bounds = array<i64: 64, 64>}, {pipeline_mode = #tpu.pipeline_mode<synchronous>, transform_indices = @transform_6, window_bounds = array<i64: 1, 64>}, {pipeline_mode = #tpu.pipeline_mode<synchronous>, transform_indices = @transform_7, window_bounds = array<i64: 64, 2>}, {pipeline_mode = #tpu.pipeline_mode<synchronous>, transform_indices = @transform_8, window_bounds = array<i64: 1, 2>}, {transform_indices = @transform_9, window_bounds = array<i64: 8, 1>}]} {
    %c0 = arith.constant 0 : index
    %c0_0 = arith.constant 0 : index
    %0 = vector.load %arg1[%c0, %c0_0] : memref<8x16xf32, #tpu.memory_space<vmem>>, vector<8x16xf32>
    %c0_1 = arith.constant 0 : index
    %c0_2 = arith.constant 0 : index
    %1 = vector.load %arg2[%c0_1, %c0_2] : memref<8x8xf32, #tpu.memory_space<vmem>>, vector<8x8xf32>
    %c0_3 = arith.constant 0 : index
    %c0_4 = arith.constant 0 : index
    %2 = vector.load %arg3[%c0_3, %c0_4] : memref<16x64xf32, #tpu.memory_space<vmem>>, vector<16x64xf32>
    %cst = arith.constant dense<0.000000e+00> : vector<8x64xf32>
    %3 = tpu.matmul %0, %2, %cst {dimension_numbers = #tpu.dot_dimension_numbers<[1], [0], [0], [1], [0, 0, 1, 1], [], []>} : vector<8x16xf32>, vector<16x64xf32>, vector<8x64xf32> -> vector<8x64xf32>
    %c0_5 = arith.constant 0 : index
    %c0_6 = arith.constant 0 : index
    %4 = vector.load %arg4[%c0_5, %c0_6] : memref<8x64xf32, #tpu.memory_space<vmem>>, vector<8x64xf32>
    %cst_7 = arith.constant dense<0.000000e+00> : vector<8x64xf32>
    %5 = tpu.matmul %1, %4, %cst_7 {dimension_numbers = #tpu.dot_dimension_numbers<[1], [0], [0], [1], [0, 0, 1, 1], [], []>} : vector<8x8xf32>, vector<8x64xf32>, vector<8x64xf32> -> vector<8x64xf32>
    %6 = arith.addf %3, %5 : vector<8x64xf32>
    %c0_8 = arith.constant 0 : index
    %c0_9 = arith.constant 0 : index
    %7 = vector.load %arg5[%c0_8, %c0_9] : memref<1x64xf32, #tpu.memory_space<vmem>>, vector<1x64xf32>
    %8 = vector.broadcast %7 : vector<1x64xf32> to vector<8x64xf32>
    %9 = arith.addf %6, %8 : vector<8x64xf32>
    %cst_10 = arith.constant 0.000000e+00 : f32
    %10 = vector.broadcast %cst_10 : f32 to vector<8x64xf32>
    %11 = arith.maximumf %9, %10 : vector<8x64xf32>
    %c0_11 = arith.constant 0 : index
    %c0_12 = arith.constant 0 : index
    %12 = vector.load %arg6[%c0_11, %c0_12] : memref<64x64xf32, #tpu.memory_space<vmem>>, vector<64x64xf32>
    %cst_13 = arith.constant dense<0.000000e+00> : vector<8x64xf32>
    %13 = tpu.matmul %11, %12, %cst_13 {dimension_numbers = #tpu.dot_dimension_numbers<[1], [0], [0], [1], [0, 0, 1, 1], [], []>} : vector<8x64xf32>, vector<64x64xf32>, vector<8x64xf32> -> vector<8x64xf32>
    %c0_14 = arith.constant 0 : index
    %c0_15 = arith.constant 0 : index
    %14 = vector.load %arg7[%c0_14, %c0_15] : memref<1x64xf32, #tpu.memory_space<vmem>>, vector<1x64xf32>
    %15 = vector.broadcast %14 : vector<1x64xf32> to vector<8x64xf32>
    %16 = arith.addf %13, %15 : vector<8x64xf32>
    %cst_16 = arith.constant 0.000000e+00 : f32
    %17 = vector.broadcast %cst_16 : f32 to vector<8x64xf32>
    %18 = arith.maximumf %16, %17 : vector<8x64xf32>
    %c0_17 = arith.constant 0 : index
    %c0_18 = arith.constant 0 : index
    %19 = vector.load %arg8[%c0_17, %c0_18] : memref<64x2xf32, #tpu.memory_space<vmem>>, vector<64x2xf32>
    %cst_19 = arith.constant dense<0.000000e+00> : vector<8x2xf32>
    %20 = tpu.matmul %18, %19, %cst_19 {dimension_numbers = #tpu.dot_dimension_numbers<[1], [0], [0], [1], [0, 0, 1, 1], [], []>} : vector<8x64xf32>, vector<64x2xf32>, vector<8x2xf32> -> vector<8x2xf32>
    %c0_20 = arith.constant 0 : index
    %c0_21 = arith.constant 0 : index
    %21 = vector.load %arg9[%c0_20, %c0_21] : memref<1x2xf32, #tpu.memory_space<vmem>>, vector<1x2xf32>
    %22 = vector.broadcast %21 : vector<1x2xf32> to vector<8x2xf32>
    %23 = arith.addf %20, %22 : vector<8x2xf32>
    %cst_22 = arith.constant dense<0x7F800000> : vector<8xf32>
    %24 = vector.multi_reduction <minimumf>, %23, %cst_22 [1] : vector<8x2xf32> to vector<8xf32>
    %25 = vector.shape_cast %24 : vector<8xf32> to vector<8x1xf32>
    %c0_23 = arith.constant 0 : index
    %c0_24 = arith.constant 0 : index
    %26 = vector.load %arg10[%c0_23, %c0_24] : memref<8x1xf32, #tpu.memory_space<vmem>>, vector<8x1xf32>
    tpu.vector_store %arg10[%c0_23, %c0_24], %25 {strides = array<i32>} : memref<8x1xf32, #tpu.memory_space<vmem>>, vector<8x1xf32>,
    return
  }
  func.func @transform_0(%arg0: i32) -> (i32, i32) {
    %c0_i32 = arith.constant 0 : i32
    %c0_i32_0 = arith.constant 0 : i32
    return %arg0, %c0_i32 : i32, i32
  }
  func.func @transform_1(%arg0: i32) -> (i32, i32) {
    %c0_i32 = arith.constant 0 : i32
    %c0_i32_0 = arith.constant 0 : i32
    return %arg0, %c0_i32 : i32, i32
  }
  func.func @transform_2(%arg0: i32) -> (i32, i32) {
    %c0_i32 = arith.constant 0 : i32
    %c0_i32_0 = arith.constant 0 : i32
    %c0_i32_1 = arith.constant 0 : i32
    return %c0_i32, %c0_i32_0 : i32, i32
  }
  func.func @transform_3(%arg0: i32) -> (i32, i32) {
    %c0_i32 = arith.constant 0 : i32
    %c0_i32_0 = arith.constant 0 : i32
    %c0_i32_1 = arith.constant 0 : i32
    return %c0_i32, %c0_i32_0 : i32, i32
  }
  func.func @transform_4(%arg0: i32) -> (i32, i32) {
    %c0_i32 = arith.constant 0 : i32
    %c0_i32_0 = arith.constant 0 : i32
    %c0_i32_1 = arith.constant 0 : i32
    return %c0_i32, %c0_i32_0 : i32, i32
  }
  func.func @transform_5(%arg0: i32) -> (i32, i32) {
    %c0_i32 = arith.constant 0 : i32
    %c0_i32_0 = arith.constant 0 : i32
    %c0_i32_1 = arith.constant 0 : i32
    return %c0_i32, %c0_i32_0 : i32, i32
  }
  func.func @transform_6(%arg0: i32) -> (i32, i32) {
    %c0_i32 = arith.constant 0 : i32
    %c0_i32_0 = arith.constant 0 : i32
    %c0_i32_1 = arith.constant 0 : i32
    return %c0_i32, %c0_i32_0 : i32, i32
  }
  func.func @transform_7(%arg0: i32) -> (i32, i32) {
    %c0_i32 = arith.constant 0 : i32
    %c0_i32_0 = arith.constant 0 : i32
    %c0_i32_1 = arith.constant 0 : i32
    return %c0_i32, %c0_i32_0 : i32, i32
  }
  func.func @transform_8(%arg0: i32) -> (i32, i32) {
    %c0_i32 = arith.constant 0 : i32
    %c0_i32_0 = arith.constant 0 : i32
    %c0_i32_1 = arith.constant 0 : i32
    return %c0_i32, %c0_i32_0 : i32, i32
  }
  func.func @transform_9(%arg0: i32) -> (i32, i32) {
    %c0_i32 = arith.constant 0 : i32
    %c0_i32_0 = arith.constant 0 : i32
    return %arg0, %c0_i32 : i32, i32
  }
}

</mosaic_0001>

<llo_original>
// kernel: tpu_custom_call.1
$region0: #{tpu_custom_call.1}
  #allocation0 [shape = 'u32[]', space=smem, size = 0x4, offset = 0x4, fixed_abs, tag = 'smem constant byte address 0x4 - core index']
  #allocation1 [shape = 'u32[72,128]{1,0:T(1,128)}', space=vmem, size = 0x9000, scoped, tag = 'internal scratch']
  %s0 = inlined_call_operand.hbm [shape: f32[8,16], index: 0, kind: input, shape index: {}]
  %s1 = inlined_call_operand.hbm [shape: f32[8,8], index: 1, kind: input, shape index: {}]
  %s2 = inlined_call_operand.hbm [shape: f32[16,64], index: 2, kind: input, shape index: {}]
  %s3 = inlined_call_operand.hbm [shape: f32[8,64], index: 3, kind: input, shape index: {}]
  %s4 = inlined_call_operand.vmem [shape: f32[1,64], index: 4, kind: input, shape index: {}]
  %s5 = inlined_call_operand.vmem [shape: f32[64,64], index: 5, kind: input, shape index: {}]
  %s6 = inlined_call_operand.vmem [shape: f32[1,64], index: 6, kind: input, shape index: {}]
  %s7 = inlined_call_operand.vmem [shape: f32[64,2], index: 7, kind: input, shape index: {}]
  %s8 = inlined_call_operand.vmem [shape: f32[1,2], index: 8, kind: input, shape index: {}]
  %s9 = inlined_call_operand.vmem [shape: f32[8,1], index: 9, kind: output, shape index: {}]
  %s10 = sld [smem:[#allocation0]]
  $region62: #{tpu_custom_call.1} parent=0
    _
  %s12 = ssub.s32 1, %s10
  %s13 = scalar_select 0, %s12, %s10
  $region1: #{tpu_custom_call.1} parent=0
    #allocation2 [shape = 'u8[4096]{0}', space=vmem, size = 0x1000, scoped, tag = 'input window, operand 0, single buffered']
    #allocation3 [shape = 's32[1]{0}', space=sflag, size = 0x4, scoped, tag = 'scoped memory for tpu_custom_call.1']
    #allocation4 [shape = 'u8[4096]{0}', space=vmem, size = 0x1000, scoped, tag = 'input window, operand 1, single buffered']
    #allocation5 [shape = 's32[1]{0}', space=sflag, size = 0x4, scoped, tag = 'scoped memory for tpu_custom_call.1']
    #allocation6 [shape = 'u8[8192]{0}', space=vmem, size = 0x2000, scoped, tag = 'input window, operand 2, single buffered']
    #allocation7 [shape = 'u8[4096]{0}', space=vmem, size = 0x1000, scoped, tag = 'input window, operand 3, single buffered']
    #allocation8 [shape = 's32[1]{0}', space=sflag, size = 0x4, scoped, tag = 'scoped memory for tpu_custom_call.1']
    %14 = vsyncpa [#allocation3], 0
    %15 = vsyncpa [#allocation5], 0
    %16 = vsyncpa [#allocation8], 0
    // Predicated region
    $region2: #{tpu_custom_call.1} parent=1 // pred_check
      _
    $region3: #{tpu_custom_call.1} parent=1 // pred_check_branch
      %18 = sbr.rel (0) target = $region5
    $region4: #{tpu_custom_call.1} parent=1 // pred_region
      %20 = vsyncadd [#allocation3], 0
      %s22 = sshll.u32 %s0, 4
      %s23 = int_to_ptr.hbm [resolvable:$true] %s22
      %s24 = sshll.u32 [#allocation2], 4
      %s25 = int_to_ptr.vmem [resolvable:$true] %s24
      %27 = dma.hbm_to_vmem [thread:$0]  %s23, 128, %s25, [#allocation3]
    $region5: #{tpu_custom_call.1} parent=1 // pred_fallthru
      _
    // Predicated region
    $region6: #{tpu_custom_call.1} parent=1 // pred_check
      _
    $region7: #{tpu_custom_call.1} parent=1 // pred_check_branch
      %29 = sbr.rel (0) target = $region9
    $region8: #{tpu_custom_call.1} parent=1 // pred_region
      %31 = vsyncadd [#allocation5], 0
      %s33 = sshll.u32 %s1, 4
      %s34 = int_to_ptr.hbm [resolvable:$true] %s33
      %s35 = sshll.u32 [#allocation4], 4
      %s36 = int_to_ptr.vmem [resolvable:$true] %s35
      %38 = dma.hbm_to_vmem [thread:$0]  %s34, 128, %s36, [#allocation5]
    $region9: #{tpu_custom_call.1} parent=1 // pred_fallthru
      _
    // Predicated region
    $region10: #{tpu_custom_call.1} parent=1 // pred_check
      _
    $region11: #{tpu_custom_call.1} parent=1 // pred_check_branch
      %40 = sbr.rel (0) target = $region13
    $region12: #{tpu_custom_call.1} parent=1 // pred_region
      %42 = vsyncadd [#allocation5], 0
      %s43 = sshll.u32 %s2, 4
      %s44 = int_to_ptr.hbm [resolvable:$true] %s43
      %s45 = sshll.u32 [#allocation6], 4
      %s46 = int_to_ptr.vmem [resolvable:$true] %s45
      %51 = dma.hbm_to_vmem [thread:$0]  %s44, 256, %s46, [#allocation5], 128, 128, 8
    $region13: #{tpu_custom_call.1} parent=1 // pred_fallthru
      _
    // Predicated region
    $region14: #{tpu_custom_call.1} parent=1 // pred_check
      _
    $region15: #{tpu_custom_call.1} parent=1 // pred_check_branch
      %53 = sbr.rel (0) target = $region17
    $region16: #{tpu_custom_call.1} parent=1 // pred_region
      %55 = vsyncadd [#allocation8], 0
      %s57 = sshll.u32 %s3, 4
      %s58 = int_to_ptr.hbm [resolvable:$true] %s57
      %s59 = sshll.u32 [#allocation7], 4
      %s60 = int_to_ptr.vmem [resolvable:$true] %s59
      %62 = dma.hbm_to_vmem [thread:$0]  %s58, 128, %s60, [#allocation8]
    $region17: #{tpu_custom_call.1} parent=1 // pred_fallthru
      _
    // Predicated region
    $region18: #{tpu_custom_call.1} parent=1 // pred_check
      _
    $region19: #{tpu_custom_call.1} parent=1 // pred_check_branch
      %64 = sbr.rel (0) target = $region21
    $region20: #{tpu_custom_call.1} parent=1 // pred_region
      _
    $region21: #{tpu_custom_call.1} parent=1 // pred_fallthru
      _
    // Predicated region
    $region22: #{tpu_custom_call.1} parent=1 // pred_check
      _
    $region23: #{tpu_custom_call.1} parent=1 // pred_check_branch
      %66 = sbr.rel (0) target = $region25
    $region24: #{tpu_custom_call.1} parent=1 // pred_region
      _
    $region25: #{tpu_custom_call.1} parent=1 // pred_fallthru
      _
    // Predicated region
    $region26: #{tpu_custom_call.1} parent=1 // pred_check
      _
    $region27: #{tpu_custom_call.1} parent=1 // pred_check_branch
      %68 = sbr.rel (0) target = $region29
    $region28: #{tpu_custom_call.1} parent=1 // pred_region
      _
    $region29: #{tpu_custom_call.1} parent=1 // pred_fallthru
      _
    // Predicated region
    $region30: #{tpu_custom_call.1} parent=1 // pred_check
      _
    $region31: #{tpu_custom_call.1} parent=1 // pred_check_branch
      %70 = sbr.rel (0) target = $region33
    $region32: #{tpu_custom_call.1} parent=1 // pred_region
      _
    $region33: #{tpu_custom_call.1} parent=1 // pred_fallthru
      _
    // Predicated region
    $region34: #{tpu_custom_call.1} parent=1 // pred_check
      _
    $region35: #{tpu_custom_call.1} parent=1 // pred_check_branch
      %72 = sbr.rel (0) target = $region37
    $region36: #{tpu_custom_call.1} parent=1 // pred_region
      _
    $region37: #{tpu_custom_call.1} parent=1 // pred_fallthru
      _
    // Predicated region
    $region38: #{tpu_custom_call.1} parent=1 // pred_check
      _
    $region39: #{tpu_custom_call.1} parent=1 // pred_check_branch
      %74 = sbr.rel (0) target = $region41
    $region40: #{tpu_custom_call.1} parent=1 // pred_region
      %76 = dma.done [#allocation3], 128
    $region41: #{tpu_custom_call.1} parent=1 // pred_fallthru
      _
    // Predicated region
    $region42: #{tpu_custom_call.1} parent=1 // pred_check
      _
    $region43: #{tpu_custom_call.1} parent=1 // pred_check_branch
      %78 = sbr.rel (0) target = $region45
    $region44: #{tpu_custom_call.1} parent=1 // pred_region
      %80 = dma.done [#allocation5], 128
    $region45: #{tpu_custom_call.1} parent=1 // pred_fallthru
      _
    // Predicated region
    $region46: #{tpu_custom_call.1} parent=1 // pred_check
      _
    $region47: #{tpu_custom_call.1} parent=1 // pred_check_branch
      %82 = sbr.rel (0) target = $region49
    $region48: #{tpu_custom_call.1} parent=1 // pred_region
      %84 = dma.done [#allocation5], 256
    $region49: #{tpu_custom_call.1} parent=1 // pred_fallthru
      _
    // Predicated region
    $region50: #{tpu_custom_call.1} parent=1 // pred_check
      _
    $region51: #{tpu_custom_call.1} parent=1 // pred_check_branch
      %86 = sbr.rel (0) target = $region53
    $region52: #{tpu_custom_call.1} parent=1 // pred_region
      %88 = dma.done [#allocation8], 128
    $region53: #{tpu_custom_call.1} parent=1 // pred_fallthru
      _
    %v89 = vld [vmem:[#allocation2] sm:$0xff]
    %v90 = vld [vmem:[#allocation4] sm:$0xff]
    %v91 = vld [vmem:[#allocation6] sm:$0xff]
    %v92 = vld [vmem:[#allocation6 + $0x8] sm:$0xff]
    %v93 = vld [vmem:[#allocation7] sm:$0xff]
    %vm94 = vcmask 64512
    %v96 = vsel %vm94, %v90, 0
    %98 = vmatpush.msra.mxu0 0.0
    %99 = vmatpush.msra.mxu0 0.0
    %100 = vmatpush.msra.mxu0 0.0
    %101 = vmatpush.msra.mxu0 0.0
    %102 = vmatpush.msra.mxu0 0.0
    %103 = vmatpush.msra.mxu0 0.0
    %104 = vmatpush.msra.mxu0 0.0
    %105 = vmatpush.msra.mxu0 0.0
    %106 = vmatpush.msra.mxu0 0.0
    %107 = vmatpush.msra.mxu0 0.0
    %108 = vmatpush.msra.mxu0 0.0
    %109 = vmatpush.msra.mxu0 0.0
    %110 = vmatpush.msra.mxu0 0.0
    %111 = vmatpush.msra.mxu0 0.0
    %112 = vmatpush.msra.mxu0 0.0
    %113 = vmatpush.msra.mxu0 %v93
    %114 = vmatmul.f32.gmra.mxu0 %v96
    %v115 = vpop.f32.mrf.mxu0
    %v116 = vadd.f32 0.0, %v115
    %117 = vdwg.mxu0
    %vm118 = vcmask 130048
    %v120 = vsel %vm118, %v89, 0
    %122 = vmatpush.msra.mxu0 0.0
    %123 = vmatpush.msra.mxu0 0.0
    %124 = vmatpush.msra.mxu0 0.0
    %125 = vmatpush.msra.mxu0 0.0
    %126 = vmatpush.msra.mxu0 0.0
    %127 = vmatpush.msra.mxu0 0.0
    %128 = vmatpush.msra.mxu0 0.0
    %129 = vmatpush.msra.mxu0 0.0
    %130 = vmatpush.msra.mxu0 0.0
    %131 = vmatpush.msra.mxu0 0.0
    %132 = vmatpush.msra.mxu0 0.0
    %133 = vmatpush.msra.mxu0 0.0
    %134 = vmatpush.msra.mxu0 0.0
    %135 = vmatpush.msra.mxu0 0.0
    %136 = vmatpush.msra.mxu0 %v92
    %137 = vmatpush.msra.mxu0 %v91
    %138 = vmatmul.f32.gmra.mxu0 %v120
    %v139 = vpop.f32.mrf.mxu0
    %v140 = vadd.f32 %v116, %v139
    %141 = vdwg.mxu0
    %v142 = vld [vmem:[%s4] sm:$0x1]
    %v144 = vperm.slane %v142, 0
    %v146 = vadd.f32 %v140, %v144
    %v147 = vmax.f32 %v146, 0.0
    %v148 = vld [vmem:[%s5] sm:$0xff]
    %v149 = vld [vmem:[%s5 + $0x8] sm:$0xff]
    %v150 = vld [vmem:[%s5 + $0x10] sm:$0xff]
    %v151 = vld [vmem:[%s5 + $0x18] sm:$0xff]
    %v152 = vld [vmem:[%s5 + $0x20] sm:$0xff]
    %v153 = vld [vmem:[%s5 + $0x28] sm:$0xff]
    %v154 = vld [vmem:[%s5 + $0x30] sm:$0xff]
    %v155 = vld [vmem:[%s5 + $0x38] sm:$0xff]
    %v156 = vld [vmem:[%s6] sm:$0x1]
    %v158 = vperm.slane %v156, 0
    %vm160 = vcmask 523264
    %v162 = vsel %vm160, %v147, 0
    %164 = vmatpush.msra.mxu0 0.0
    %165 = vmatpush.msra.mxu0 0.0
    %166 = vmatpush.msra.mxu0 0.0
    %167 = vmatpush.msra.mxu0 0.0
    %168 = vmatpush.msra.mxu0 0.0
    %169 = vmatpush.msra.mxu0 0.0
    %170 = vmatpush.msra.mxu0 0.0
    %171 = vmatpush.msra.mxu0 0.0
    %172 = vmatpush.msra.mxu0 %v155
    %173 = vmatpush.msra.mxu0 %v154
    %174 = vmatpush.msra.mxu0 %v153
    %175 = vmatpush.msra.mxu0 %v152
    %176 = vmatpush.msra.mxu0 %v151
    %177 = vmatpush.msra.mxu0 %v150
    %178 = vmatpush.msra.mxu0 %v149
    %179 = vmatpush.msra.mxu0 %v148
    %180 = vmatmul.f32.gmra.mxu0 %v162
    %v181 = vpop.f32.mrf.mxu0
    %v182 = vadd.f32 %v158, %v181
    %183 = vdwg.mxu0
    %v184 = vmax.f32 %v182, 0.0
    %v185 = vld [vmem:[%s7] sm:$0xff]
    %v186 = vld [vmem:[%s7 + $0x8] sm:$0xff]
    %v187 = vld [vmem:[%s7 + $0x10] sm:$0xff]
    %v188 = vld [vmem:[%s7 + $0x18] sm:$0xff]
    %v189 = vld [vmem:[%s7 + $0x20] sm:$0xff]
    %v190 = vld [vmem:[%s7 + $0x28] sm:$0xff]
    %v191 = vld [vmem:[%s7 + $0x30] sm:$0xff]
    %v192 = vld [vmem:[%s7 + $0x38] sm:$0xff]
    %v193 = vld [vmem:[%s8] sm:$0x1]
    %v195 = vperm.slane %v193, 0
    %v198 = vsel %vm160, %v184, 0
    %200 = vmatpush.msra.mxu0 0.0
    %201 = vmatpush.msra.mxu0 0.0
    %202 = vmatpush.msra.mxu0 0.0
    %203 = vmatpush.msra.mxu0 0.0
    %204 = vmatpush.msra.mxu0 0.0
    %205 = vmatpush.msra.mxu0 0.0
    %206 = vmatpush.msra.mxu0 0.0
    %207 = vmatpush.msra.mxu0 0.0
    %208 = vmatpush.msra.mxu0 %v192
    %209 = vmatpush.msra.mxu0 %v191
    %210 = vmatpush.msra.mxu0 %v190
    %211 = vmatpush.msra.mxu0 %v189
    %212 = vmatpush.msra.mxu0 %v188
    %213 = vmatpush.msra.mxu0 %v187
    %214 = vmatpush.msra.mxu0 %v186
    %215 = vmatpush.msra.mxu0 %v185
    %216 = vmatmul.f32.gmra.mxu0 %v198
    %v217 = vpop.f32.mrf.mxu0
    %v218 = vadd.f32 %v195, %v217
    %219 = vdwg.mxu0
    %vm220 = vcmask 15360
    %v221 = vsel %vm220, %v218, inf
    %222 = vmin.xlane.f32.xlu0 %v221
    %v223 = vpop.xlane.xlu0 %222
    %vm224 = vcmask 7168
    %225 = vst.msk [vmem:[%s9] sm:$0xff] %vm224, %v223
    // Predicated region
    $region54: #{tpu_custom_call.1} parent=1 // pred_check
      _
    $region55: #{tpu_custom_call.1} parent=1 // pred_check_branch
      %227 = sbr.rel (0) target = $region57
    $region56: #{tpu_custom_call.1} parent=1 // pred_region
      _
    $region57: #{tpu_custom_call.1} parent=1 // pred_fallthru
      _
    // Predicated region
    $region58: #{tpu_custom_call.1} parent=1 // pred_check
      _
    $region59: #{tpu_custom_call.1} parent=1 // pred_check_branch
      %229 = sbr.rel (0) target = $region61
    $region60: #{tpu_custom_call.1} parent=1 // pred_region
      _
    $region61: #{tpu_custom_call.1} parent=1 // pred_fallthru
      _
    %230 = vsyncpa [#allocation3], 1
    %231 = vsyncpa [#allocation5], 1
    %232 = vsyncpa [#allocation8], 1

</llo_original>
